<compile_context>
chip_gen: v6e
topology: v6e:2x2x1
jax: 0.10.0
libtpu: 0.0.40
codegen_flags: <defaults>
</compile_context>

<pallas_src>
import functools

import jax
import jax.numpy as jnp
from jax.experimental import pallas as pl
from jax.experimental.pallas import tpu as pltpu

EPS = 1e-5


def _round_up(x, m):
    return (x + m - 1) // m * m


def _cdiv(a, b):
    return (a + b - 1) // b


# ----------------------------------------------------------------------------
# Generation-aware VMEM budget
# ----------------------------------------------------------------------------
def _vmem_budget_bytes():
    try:
        cap = int(pltpu.get_tpu_info().vmem_capacity_bytes)
    except Exception:
        cap = 64 * 1024 * 1024          # conservative (v7x-like) fallback
    if cap >= 128 * 1024 * 1024:        # v5e / v6e: 128 MiB physical
        return 100 * 1024 * 1024
    return 48 * 1024 * 1024             # v7x: 64 MiB per TensorCore


_VMEM_LIMIT = _vmem_budget_bytes()
_WEIGHT_RESIDENT_BYTES = _VMEM_LIMIT // 6   # max bf16 weight held resident


# ----------------------------------------------------------------------------
# Static tile selection
# ----------------------------------------------------------------------------
def _choose_k_tile(K):
    """(Kp, tk): single k-step when the weight tile is comfortably small,
    otherwise stream 2048-wide K tiles (multi-k fallback path)."""
    Kp = _round_up(K, 128)
    if Kp <= 4608:
        return Kp, Kp
    tk = 2048
    return _round_up(K, tk), tk


def _choose_m_tile(M, max_tm=512):
    """Large ~512-row M blocks (review item); small M -> one tight block."""
    Mr = _round_up(M, 16)
    if Mr <= max_tm:
        return Mr, Mr
    nblocks = _cdiv(Mr, max_tm)
    tm = _round_up(_cdiv(Mr, nblocks), 16)
    return nblocks * tm, tm


def _pick_tn(Np):
    if Np <= 256:
        return Np
    return 256 if Np % 256 == 0 else 128


def _choose_conv_tc(C):
    """Channel block for the direct 3x3 path (multiple of 128, or C itself)."""
    if C <= 1024:
        return C
    for tc in (1024, 512, 256, 128):
        if C % tc == 0:
            return tc
    return C


# ----------------------------------------------------------------------------
# Pallas kernel 1: tiled matmul + bias [+ residual] [+ ReLU]  (1x1 / im2col)
# ----------------------------------------------------------------------------
def _matmul_bias_kernel(*refs, relu, has_res, nk):
    acc_ref = refs[-1] if nk > 1 else None
    core = refs[:-1] if nk > 1 else refs
    if has_res:
        x_ref, w_ref, b_ref, r_ref, o_ref = core
    else:
        x_ref, w_ref, b_ref, o_ref = core
        r_ref = None

    part = jnp.dot(x_ref[...], w_ref[...], preferred_element_type=jnp.float32)

    def _finalize(acc):
        y = acc + b_ref[...]
        if r_ref is not None:
            y = y + r_ref[...].astype(jnp.float32)
        if relu:
            y = jnp.maximum(y, 0.0)
        return y.astype(o_ref.dtype)

    if nk == 1:
        o_ref[...] = _finalize(part)
    else:
        k = pl.program_id(2)

        @pl.when(k == 0)
        def _init():
            acc_ref[...] = jnp.zeros_like(acc_ref)

        acc_ref[...] += part

        @pl.when(k == nk - 1)
        def _last():
            o_ref[...] = _finalize(acc_ref[...])


def _weight_spec(tk, tn, multibuf):
    idx = lambda i, j, k: (k, j)
    if multibuf and hasattr(pl, "Buffered"):
        try:
            return pl.BlockSpec((tk, tn), idx, pipeline_mode=pl.Buffered(3))
        except TypeError:
            pass
    return pl.BlockSpec((tk, tn), idx)


def fused_conv_matmul(p, x2d, relu, residual2d=None):
    """act((x2d @ W) + bias [+ residual]); bf16 operands/outputs, f32 acc."""
    M, K = x2d.shape
    N = p["N"]
    assert K == p["K"]
    Kp, Np, tk = p["Kp"], p["Np"], p["tk"]
    nk = Kp // tk
    has_res = residual2d is not None

    Mp, tm = _choose_m_tile(M)

    def _vmem_est(tm_, tk_, tn_):
        b = 2 * tm_ * tk_ * 2                         # x double-buffer
        b += (3 if nk > 1 else 2) * tk_ * tn_ * 2     # weight buffers
        b += 2 * tm_ * tn_ * 2                        # output double-buffer
        if nk > 1:
            b += tm_ * tn_ * 4                        # f32 accumulator
        if has_res:
            b += 2 * tm_ * tn_ * 2                    # residual double-buffer
        return b

    tn = _pick_tn(Np)
    if (nk == 1 and Kp * Np * 2 <= _WEIGHT_RESIDENT_BYTES
            and _vmem_est(tm, Kp, Np) <= int(0.80 * _VMEM_LIMIT)):
        tn = Np                         # whole weight resident across M blocks

    # keep >= 2 independent output blocks (both v7x TensorCores busy)
    if (Mp // tm) * (Np // tn) < 2:
        if Np % 256 == 0:
            tn = Np // 2
        elif _round_up(M, 16) > 16:
            tm = _round_up(_cdiv(_round_up(M, 16), 2), 16)
            Mp = 2 * tm

    xp = x2d if x2d.dtype == jnp.bfloat16 else x2d.astype(jnp.bfloat16)
    if (Mp, Kp) != (M, K):
        xp = jnp.pad(xp, ((0, Mp - M), (0, Kp - K)))

    args = [xp, p["wp"], p["bp"]]
    in_specs = [
        pl.BlockSpec((tm, tk), lambda i, j, k: (i, k)),
        _weight_spec(tk, tn, multibuf=nk > 1),
        pl.BlockSpec((1, tn), lambda i, j, k: (0, j)),
    ]
    if has_res:
        rp = (residual2d if residual2d.dtype == jnp.bfloat16
              else residual2d.astype(jnp.bfloat16))
        if rp.shape != (Mp, Np):
            rp = jnp.pad(rp, ((0, Mp - rp.shape[0]), (0, Np - rp.shape[1])))
        args.append(rp)
        in_specs.append(pl.BlockSpec((tm, tn), lambda i, j, k: (i, j)))

    scratch = [pltpu.VMEM((tm, tn), jnp.float32)] if nk > 1 else []
    grid = (Mp // tm, Np // tn, nk)
    out = pl.pallas_call(
        functools.partial(_matmul_bias_kernel, relu=relu, has_res=has_res, nk=nk),
        out_shape=jax.ShapeDtypeStruct((Mp, Np), jnp.bfloat16),
        grid_spec=pltpu.PrefetchScalarGridSpec(
            num_scalar_prefetch=0,
            grid=grid,
            in_specs=in_specs,
            out_specs=pl.BlockSpec((tm, tn), lambda i, j, k: (i, j)),
            scratch_shapes=scratch,
        ),
        compiler_params=pltpu.CompilerParams(
            dimension_semantics=("parallel", "parallel", "arbitrary"),
            vmem_limit_bytes=_VMEM_LIMIT),
    )(*args)
    if (Mp, Np) != (M, N):
        out = out[:M, :N]
    return out


# ----------------------------------------------------------------------------
# Pallas kernel 2: direct 3x3 stride-1 conv (no im2col in HBM)
#   padded activation flattened to (B, R, C); each tap is a shifted row window
# ----------------------------------------------------------------------------
def _direct3x3_kernel(x_ref, w_ref, b_ref, o_ref, acc_ref, *,
                      tap_offsets, tc, rows, relu, nk):
    kc = pl.program_id(2)

    @pl.when(kc == 0)
    def _init():
        acc_ref[...] = jnp.zeros_like(acc_ref)

    for t, off in enumerate(tap_offsets):
        xs = x_ref[off:off + rows, :]                     # (rows, tc) bf16
        wt = w_ref[t * tc:(t + 1) * tc, :]                # (tc, tn)  bf16
        acc_ref[...] += jnp.dot(xs, wt, preferred_element_type=jnp.float32)

    @pl.when(kc == nk - 1)
    def _fin():
        y = acc_ref[...] + b_ref[...]
        if relu:
            y = jnp.maximum(y, 0.0)
        o_ref[...] = y.astype(o_ref.dtype)


def conv3x3_direct(p, x, relu):
    """3x3 / stride-1 / pad==dilation conv without materializing im2col.
    Returns None if the single-M-block footprint would not fit VMEM."""
    d = p["dil"]
    B, H, W, C = x.shape
    assert C == p["Cin"]
    Hp, Wp = H + 2 * d, W + 2 * d
    Ho, Wo = H, W
    P = Ho * Wp                      # flat output rows (cols >= Wo are garbage)
    Pr = _round_up(P, 8)
    R = Pr + (2 * Wp + 2) * d        # flat input rows required
    tc, nkc, Np, N = p["tc"], p["nkc"], p["Np"], p["N"]

    tn = _pick_tn(Np)
    if B * (Np // tn) < 2 and Np % 256 == 0:
        tn = min(tn, Np // 2)

    est = (2 * R * tc * 2 + 2 * 9 * tc * tn * 2
           + Pr * tn * 4 + 2 * Pr * tn * 2 + (1 << 20))
    if est > int(0.85 * _VMEM_LIMIT):
        return None                  # caller falls back to im2col matmul path

    xpad = jnp.pad(x, ((0, 0), (d, d), (d, d), (0, 0)))
    xf = xpad.reshape(B, Hp * Wp, C)
    xf = jnp.pad(xf, ((0, 0), (0, R - Hp * Wp), (0, 0)))

    offs = tuple((i * Wp + j) * d for i in range(3) for j in range(3))
    grid = (B, Np // tn, nkc)
    out = pl.pallas_call(
        functools.partial(_direct3x3_kernel, tap_offsets=offs, tc=tc, rows=Pr,
                          relu=relu, nk=nkc),
        out_shape=jax.ShapeDtypeStruct((B, Pr, Np), jnp.bfloat16),
        grid_spec=pltpu.PrefetchScalarGridSpec(
            num_scalar_prefetch=0,
            grid=grid,
            in_specs=[
                pl.BlockSpec((None, R, tc), lambda b, j, k: (b, 0, k)),
                pl.BlockSpec((9 * tc, tn), lambda b, j, k: (k, j)),
                pl.BlockSpec((1, tn), lambda b, j, k: (0, j)),
            ],
            out_specs=pl.BlockSpec((None, Pr, tn), lambda b, j, k: (b, 0, j)),
            scratch_shapes=[pltpu.VMEM((Pr, tn), jnp.float32)],
        ),
        compiler_params=pltpu.CompilerParams(
            dimension_semantics=("parallel", "parallel", "arbitrary"),
            vmem_limit_bytes=_VMEM_LIMIT),
    )(xf, p["wd"], p["bp"])
    out = out[:, :P, :N].reshape(B, Ho, Wp, N)[:, :, :Wo, :]
    return out


# ----------------------------------------------------------------------------
# Conv glue (im2col for stride-2 3x3), pooling, bilinear resize
# ----------------------------------------------------------------------------
def _extract_patches(x, k, stride, pad, dil):
    B, H, W, C = x.shape
    xp = jnp.pad(x, ((0, 0), (pad, pad), (pad, pad), (0, 0)))
    Hp, Wp = H + 2 * pad, W + 2 * pad
    Ho = (Hp - dil * (k - 1) - 1) // stride + 1
    Wo = (Wp - dil * (k - 1) - 1) // stride + 1
    pieces = []
    for i in range(k):
        for j in range(k):
            pieces.append(
                xp[:, i * dil: i * dil + stride * (Ho - 1) + 1: stride,
                      j * dil: j * dil + stride * (Wo - 1) + 1: stride, :])
    pat = jnp.stack(pieces, axis=-2)               # (B, Ho, Wo, k*k, C)
    return pat.reshape(B, Ho, Wo, k * k * C), Ho, Wo


def conv_unit_apply(p, x, residual=None, relu=None):
    """Conv2d (+ folded BN / bias) (+ residual) (+ ReLU)."""
    k, stride, pad, dil = p["k"], p["stride"], p["pad"], p["dil"]
    relu_flag = p["relu"] if relu is None else relu
    if x.dtype != jnp.bfloat16:
        x = x.astype(jnp.bfloat16)

    if "wd" in p and residual is None:             # direct 3x3 stride-1 path
        y = conv3x3_direct(p, x, relu_flag)
        if y is not None:
            return y

    B, H, W, C = x.shape
    if k == 1 and stride == 1 and pad == 0:
        patches, Ho, Wo = x, H, W
    else:
        patches, Ho, Wo = _extract_patches(x, k, stride, pad, dil)
    M = B * Ho * Wo
    res2d = None if residual is None else residual.reshape(M, -1)
    y = fused_conv_matmul(p, patches.reshape(M, -1), relu_flag, res2d)
    return y.reshape(B, Ho, Wo, -1)


def max_pool_3x3_s2_p1(x):
    B, H, W, C = x.shape
    xp = jnp.pad(x, ((0, 0), (1, 1), (1, 1), (0, 0)),
                 constant_values=-jnp.inf)
    Ho = (H + 2 - 3) // 2 + 1
    Wo = (W + 2 - 3) // 2 + 1
    out = None
    for i in range(3):
        for j in range(3):
            sl = xp[:, i: i + 2 * (Ho - 1) + 1: 2,
                       j: j + 2 * (Wo - 1) + 1: 2, :]
            out = sl if out is None else jnp.maximum(out, sl)
    return out


def adaptive_avg_pool(x, out_size):
    B, H, W, C = x.shape
    xf = x.astype(jnp.float32)
    rows = []
    for i in range(out_size):
        hs, he = (i * H) // out_size, ((i + 1) * H + out_size - 1) // out_size
        cols = []
        for j in range(out_size):
            ws, we = (j * W) // out_size, ((j + 1) * W + out_size - 1) // out_size
            cols.append(jnp.mean(xf[:, hs:he, ws:we, :], axis=(1, 2)))
        rows.append(jnp.stack(cols, axis=1))
    return jnp.stack(rows, axis=1).astype(x.dtype)         # (B, out, out, C)


def resize_bilinear_align_corners(x, out_h, out_w):
    B, H, W, C = x.shape
    xf = x.astype(jnp.float32)

    def coords(out, inn):
        if out == 1 or inn == 1:
            return jnp.zeros((out,), jnp.float32)
        return jnp.arange(out, dtype=jnp.float32) * ((inn - 1) / (out - 1))

    ys = coords(out_h, H)
    xs = coords(out_w, W)
    y0 = jnp.floor(ys).astype(jnp.int32)
    y1 = jnp.minimum(y0 + 1, H - 1)
    wy = (ys - y0.astype(jnp.float32)).reshape(1, out_h, 1, 1)
    x0 = jnp.floor(xs).astype(jnp.int32)
    x1 = jnp.minimum(x0 + 1, W - 1)
    wx = (xs - x0.astype(jnp.float32)).reshape(1, 1, out_w, 1)

    def g(yi, xi):
        return xf[:, yi][:, :, xi]                 # (B, out_h, out_w, C)

    top = g(y0, x0) * (1.0 - wx) + g(y0, x1) * wx
    bot = g(y1, x0) * (1.0 - wx) + g(y1, x1) * wx
    return top * (1.0 - wy) + bot * wy             # f32


# ----------------------------------------------------------------------------
# Deterministic parameter construction (mirrors the PyTorch __init__ shapes)
# ----------------------------------------------------------------------------
class KeyGen:
    def __init__(self, seed):
        self._key = jax.random.PRNGKey(seed)

    def __call__(self):
        self._key, k = jax.random.split(self._key)
        return k


def init_conv_unit(kg, cin, cout, k, stride=1, pad=0, dil=1, relu=True,
                   bn=True, conv_bias=False):
    fan_in = cin * k * k
    w = jax.random.normal(kg(), (k, k, cin, cout), jnp.float32) * jnp.sqrt(2.0 / fan_in)
    if bn:
        gamma = 1.0 + 0.1 * jax.random.normal(kg(), (cout,), jnp.float32)
        beta = 0.05 * jax.random.normal(kg(), (cout,), jnp.float32)
        rmean = 0.05 * jax.random.normal(kg(), (cout,), jnp.float32)
        rvar = 1.0 + 0.1 * jax.random.uniform(kg(), (cout,), jnp.float32)
        scale = gamma / jnp.sqrt(rvar + EPS)
        bias = beta - rmean * scale
    else:
        scale = jnp.ones((cout,), jnp.float32)
        bias = (0.01 * jax.random.normal(kg(), (cout,), jnp.float32)
                if conv_bias else jnp.zeros((cout,), jnp.float32))

    # Fold the BatchNorm scale straight into the bf16 weight (bias-only epilogue).
    wf = w * scale.reshape(1, 1, 1, cout)

    K, N = k * k * cin, cout
    Kp, tk = _choose_k_tile(K)
    Np = _round_up(N, 128)
    wp = jnp.pad(wf.reshape(K, N), ((0, Kp - K), (0, Np - N))).astype(jnp.bfloat16)
    bp = jnp.pad(bias, (0, Np - N)).reshape(1, Np).astype(jnp.float32)

    p = dict(wp=wp, bp=bp, K=K, N=N, Kp=Kp, Np=Np, tk=tk,
             k=k, stride=stride, pad=pad, dil=dil, relu=relu, Cin=cin)

    # Direct (no-im2col) weight layout for 3x3 stride-1 convs:
    #   (nkc, 9 taps, tc, Np) flattened -> block (9*tc, tn) per channel block.
    if k == 3 and stride == 1 and pad == dil and cin % _choose_conv_tc(cin) == 0:
        tc = _choose_conv_tc(cin)
        nkc = cin // tc
        wd = wf.reshape(9, nkc, tc, N).transpose(1, 0, 2, 3).reshape(nkc * 9 * tc, N)
        wd = jnp.pad(wd, ((0, 0), (0, Np - N))).astype(jnp.bfloat16)
        p.update(wd=wd, tc=tc, nkc=nkc)
    return p


def init_bottleneck_psp(kg, cin, mid, cout, stride, dilation):
    return dict(
        cbr1=init_conv_unit(kg, cin, mid, 1),
        cbr2=init_conv_unit(kg, mid, mid, 3, stride=stride, pad=dilation, dil=dilation),
        cb3=init_conv_unit(kg, mid, cout, 1, relu=False),
        cbres=init_conv_unit(kg, cin, cout, 1, stride=stride, relu=False),
    )


def init_bottleneck_identity(kg, cin, mid, dilation):
    return dict(
        cbr1=init_conv_unit(kg, cin, mid, 1),
        cbr2=init_conv_unit(kg, mid, mid, 3, stride=1, pad=dilation, dil=dilation),
        cb3=init_conv_unit(kg, mid, cin, 1, relu=False),
    )


def init_res_block(kg, n_blocks, cin, mid, cout, stride, dilation):
    blocks = [init_bottleneck_psp(kg, cin, mid, cout, stride, dilation)]
    for _ in range(n_blocks - 1):
        blocks.append(init_bottleneck_identity(kg, cout, mid, dilation))
    return blocks


def init_pyramid(kg, cin, pool_sizes):
    cout = cin // len(pool_sizes)
    return dict(pool_sizes=list(pool_sizes),
                cbrs=[init_conv_unit(kg, cin, cout, 1) for _ in pool_sizes])


def init_decode(kg, cin, mid, n_classes):
    return dict(
        cbr=init_conv_unit(kg, cin, mid, 3, stride=1, pad=1),
        cls=init_conv_unit(kg, mid, n_classes, 1, relu=False, bn=False, conv_bias=True),
    )


def init_pspnet(kg, n_classes):
    block_config = [3, 4, 6, 3]
    return dict(
        fconv=[init_conv_unit(kg, 3, 64, 3, stride=2, pad=1),
               init_conv_unit(kg, 64, 64, 3, stride=1, pad=1),
               init_conv_unit(kg, 64, 128, 3, stride=1, pad=1)],
        res1=init_res_block(kg, block_config[0], 128, 64, 256, 1, 1),
        res2=init_res_block(kg, block_config[1], 256, 128, 512, 2, 1),
        dres1=init_res_block(kg, block_config[2], 512, 256, 1024, 1, 2),
        dres2=init_res_block(kg, block_config[3], 1024, 512, 2048, 1, 4),
        ppm=init_pyramid(kg, 2048, [6, 3, 2, 1]),
        decode=init_decode(kg, 4096, 512, n_classes),
        aux=init_decode(kg, 1024, 256, n_classes),
    )


# ----------------------------------------------------------------------------
# Forward pass
# ----------------------------------------------------------------------------
def apply_res_block(blocks, x):
    for b in blocks:
        r = conv_unit_apply(b["cbres"], x) if "cbres" in b else x
        h = conv_unit_apply(b["cbr1"], x)
        h = conv_unit_apply(b["cbr2"], h)
        # cb3 is conv+BN (no ReLU); residual add + final ReLU fused in epilogue.
        x = conv_unit_apply(b["cb3"], h, residual=r, relu=True)
    return x


def pyramid_apply(p, x, out_h, out_w):
    outs = [x]
    for ps, cbr in zip(p["pool_sizes"], p["cbrs"]):
        y = adaptive_avg_pool(x, ps)
        y = conv_unit_apply(cbr, y)
        y = resize_bilinear_align_corners(y, out_h, out_w).astype(x.dtype)
        outs.append(y)
    return jnp.concatenate(outs, axis=-1)


def decode_apply(p, x, out_h, out_w):
    y = conv_unit_apply(p["cbr"], x)
    # TODO(synk): Dropout2d(p=0.1) -> identity (eval semantics)
    y = conv_unit_apply(p["cls"], y)
    return resize_bilinear_align_corners(y, out_h, out_w)   # f32


def pspnet_apply(params, x_nchw, img_size, img_size_8):
    x = jnp.transpose(x_nchw, (0, 2, 3, 1)).astype(jnp.bfloat16)   # NCHW -> NHWC
    for cu in params["fconv"]:
        x = conv_unit_apply(cu, x)
    x = max_pool_3x3_s2_p1(x)
    x = apply_res_block(params["res1"], x)
    x = apply_res_block(params["res2"], x)
    x = apply_res_block(params["dres1"], x)
    out_aux = decode_apply(params["aux"], x, img_size, img_size)
    x = apply_res_block(params["dres2"], x)
    x = pyramid_apply(params["ppm"], x, img_size_8, img_size_8)
    out = decode_apply(params["decode"], x, img_size, img_size)
    # NHWC -> NCHW, f32, to match PyTorch outputs
    return (jnp.transpose(out, (0, 3, 1, 2)).astype(jnp.float32),
            jnp.transpose(out_aux, (0, 3, 1, 2)).astype(jnp.float32))


# ----------------------------------------------------------------------------
if __name__ == "__main__":
    batch_size = 2
    n_classes = 21
    img_size = 48               # scaled-down analogue of 475 (original module)
    img_size_8 = img_size // 8  # analogue of 60

    kg = KeyGen(0)
    params = init_pspnet(kg, n_classes)

    dummy_img = jax.random.uniform(jax.random.PRNGKey(0),
                                   (batch_size, 3, img_size, img_size),
                                   dtype=jnp.float32)

    output, output_aux = pspnet_apply(params, dummy_img, img_size, img_size_8)
    jax.block_until_ready((output, output_aux))

    assert output.shape == (batch_size, n_classes, img_size, img_size)
    assert output_aux.shape == (batch_size, n_classes, img_size, img_size)
    assert bool(jnp.all(jnp.isfinite(output))) and bool(jnp.all(jnp.isfinite(output_aux)))

    print("KERNEL_OK")
</pallas_src>

<mosaic_0001>
module attributes {stable_mosaic.version = 11 : i64} {
  func.func @_matmul_bias_kernel(%arg0: i32, %arg1: i32, %arg2: i32, %arg3: memref<384x128xbf16, #tpu.memory_space<vmem>>, %arg4: memref<128x128xbf16, #tpu.memory_space<vmem>>, %arg5: memref<1x128xf32, #tpu.memory_space<vmem>>, %arg6: memref<384x128xbf16, #tpu.memory_space<vmem>>) attributes {dimension_semantics = [#tpu.dimension_semantics<parallel>, #tpu.dimension_semantics<parallel>, #tpu.dimension_semantics<arbitrary>], iteration_bounds = array<i64: 3, 1, 1>, scalar_prefetch = 0 : i64, scratch_operands = 0 : i64, tpu.core_type = #tpu.core_type<tc>, window_params = [{transform_indices = @transform_0, window_bounds = array<i64: 384, 128>}, {transform_indices = @transform_1, window_bounds = array<i64: 128, 128>}, {transform_indices = @transform_2, window_bounds = array<i64: 1, 128>}, {transform_indices = @transform_3, window_bounds = array<i64: 384, 128>}]} {
    %c0 = arith.constant 0 : index
    %c0_0 = arith.constant 0 : index
    %0 = vector.load %arg3[%c0, %c0_0] : memref<384x128xbf16, #tpu.memory_space<vmem>>, vector<384x128xbf16>
    %c0_1 = arith.constant 0 : index
    %c0_2 = arith.constant 0 : index
    %1 = vector.load %arg4[%c0_1, %c0_2] : memref<128x128xbf16, #tpu.memory_space<vmem>>, vector<128x128xbf16>
    %cst = arith.constant dense<0.000000e+00> : vector<384x128xf32>
    %2 = tpu.matmul %0, %1, %cst {dimension_numbers = #tpu.dot_dimension_numbers<[1], [0], [0], [1], [0, 0, 1, 1], [], []>} : vector<384x128xbf16>, vector<128x128xbf16>, vector<384x128xf32> -> vector<384x128xf32>
    %c0_3 = arith.constant 0 : index
    %c0_4 = arith.constant 0 : index
    %3 = vector.load %arg5[%c0_3, %c0_4] : memref<1x128xf32, #tpu.memory_space<vmem>>, vector<1x128xf32>
    %4 = vector.broadcast %3 : vector<1x128xf32> to vector<384x128xf32>
    %5 = arith.addf %2, %4 : vector<384x128xf32>
    %cst_5 = arith.constant 0.000000e+00 : f32
    %6 = vector.broadcast %cst_5 : f32 to vector<384x128xf32>
    %7 = arith.maximumf %5, %6 : vector<384x128xf32>
    %8 = arith.truncf %7 : vector<384x128xf32> to vector<384x128xbf16>
    %c0_6 = arith.constant 0 : index
    %c0_7 = arith.constant 0 : index
    %9 = vector.load %arg6[%c0_6, %c0_7] : memref<384x128xbf16, #tpu.memory_space<vmem>>, vector<384x128xbf16>
    tpu.vector_store %arg6[%c0_6, %c0_7], %8 {strides = array<i32>} : memref<384x128xbf16, #tpu.memory_space<vmem>>, vector<384x128xbf16>,
    return
  }
  func.func @transform_0(%arg0: i32, %arg1: i32, %arg2: i32) -> (i32, i32) {
    %c0_i32 = arith.constant 0 : i32
    return %arg0, %arg2 : i32, i32
  }
  func.func @transform_1(%arg0: i32, %arg1: i32, %arg2: i32) -> (i32, i32) {
    %c0_i32 = arith.constant 0 : i32
    return %arg2, %arg1 : i32, i32
  }
  func.func @transform_2(%arg0: i32, %arg1: i32, %arg2: i32) -> (i32, i32) {
    %c0_i32 = arith.constant 0 : i32
    %c0_i32_0 = arith.constant 0 : i32
    return %c0_i32, %arg1 : i32, i32
  }
  func.func @transform_3(%arg0: i32, %arg1: i32, %arg2: i32) -> (i32, i32) {
    %c0_i32 = arith.constant 0 : i32
    return %arg0, %arg1 : i32, i32
  }
}

</mosaic_0001>

<llo_original>
// kernel: tpu_custom_call.1
$region0: #{tpu_custom_call.1}
  #allocation0 [shape = 'u32[]', space=smem, size = 0x4, offset = 0x4, fixed_abs, tag = 'smem constant byte address 0x4 - core index']
  #allocation1 [shape = 'u32[144,128]{1,0:T(1,128)}', space=vmem, size = 0x12000, scoped, tag = 'internal scratch']
  %s0 = inlined_call_operand.hbm [shape: bf16[1152,128], index: 0, kind: input, shape index: {}]
  %s1 = inlined_call_operand.hbm [shape: bf16[128,128], index: 1, kind: input, shape index: {}]
  %s2 = inlined_call_operand.vmem [shape: f32[1,128], index: 2, kind: input, shape index: {}]
  %s3 = inlined_call_operand.hbm [shape: bf16[1152,128], index: 3, kind: output, shape index: {}]
  %s4 = sld [smem:[#allocation0]]
  $region53: #{tpu_custom_call.1} parent=0
    _
  %s6 = ssub.s32 1, %s4
  %s7 = scalar_select 0, %s6, %s4
  $region1: #{tpu_custom_call.1} parent=0
    #allocation2 [shape = 'u8[196608]{0}', space=vmem, size = 0x30000, scoped, tag = 'input window, operand 0']
    #allocation3 [shape = 's32[2]{0}', space=sflag, size = 0x8, scoped, tag = 'scoped memory for tpu_custom_call.1']
    #allocation4 [shape = 's32[2]{0}', space=sflag, size = 0x8, scoped, tag = 'scoped memory for tpu_custom_call.1']
    #allocation5 [shape = 'u8[32768]{0}', space=vmem, size = 0x8000, scoped, tag = 'input window, operand 1, single buffered']
    #allocation6 [shape = 's32[1]{0}', space=sflag, size = 0x4, scoped, tag = 'scoped memory for tpu_custom_call.1']
    #allocation7 [shape = 'u8[196608]{0}', space=vmem, size = 0x30000, scoped, tag = 'output window, operand 0']
    %8 = vsyncpa [#allocation3], 0
    %s9 = scalar_lea.sflag [#allocation3], 1
    %10 = vsyncpa %s9, 0
    %11 = vsyncpa [#allocation6], 0
    %12 = vsyncpa [#allocation4], 0
    %s13 = scalar_lea.sflag [#allocation4], 1
    %14 = vsyncpa %s13, 0
    loop: start=0, step=1, limit=5
    $region2: #{tpu_custom_call.1} parent=1 // loop_pre_header
      _
    $region3: #{tpu_custom_call.1} parent=1 // loop_header
      %s16 = sphi 0, %s20
      %p17 = scmp.ge.s32.totalorder %s16, 5
      %s23 = sphi 0, %s42
      %s24 = sphi 0, %s38
      %s25 = sphi 0, %s34
      %s26 = sphi 0, %s23
      %s27 = sphi 0, %s24
      %s28 = sphi 0, %s25
      %s29 = sphi 0, %s26
      %s30 = sphi 0, %s27
      %s31 = sphi 0, %s28
      %s47 = sphi 0, %s49
      %s50 = sphi 0, %s47
      %s51 = sphi 0, %s50
      %s67 = sphi 0, %s51
      %s75 = sphi 0, %s77
      %s78 = sphi 0, %s75
      %s79 = sphi 0, %s78
      %s95 = sphi 0, %s79
      %s101 = sphi 0, %s103
      %s104 = sphi 0, %s101
      %s105 = sphi 0, %s104
      %s121 = sphi 0, %s105
      %s129 = sphi 0, %s131
      %s132 = sphi 0, %s129
      %s133 = sphi 0, %s132
      %s149 = sphi 0, %s133
    $region4: #{tpu_custom_call.1} parent=1 // loop_header_branch
      %19 = sbr.rel (%p17) target = $region8
    $region5: #{tpu_custom_call.1} parent=1 // loop_body
      %s21 = ssub.s32 %s16, 1
      %s22 = ssub.s32 %s16, 2
      %s32 = sadd.s32 1, %s25
      %p33 = scmp.ge.s32.totalorder %s32, 1
      %s34 = scalar_select %p33, 0, %s32
      %s35 = sadd.s32 1, %s24
      %s36 = scalar_select %p33, %s35, %s24
      %p37 = scmp.ge.s32.totalorder %s36, 1
      %s38 = scalar_select %p37, 0, %s36
      %s39 = sadd.s32 1, %s23
      %s40 = scalar_select %p37, %s39, %s23
      %p41 = scmp.ge.s32.totalorder %s40, 3
      %s42 = scalar_select %p41, 0, %s40
      %s43 = ssub.s32 %s23, %s42
      %s44 = ssub.s32 %s25, %s34
      %s45 = sor.u32 %s43, %s44
      %p46 = scmp.eq.s32.totalorder %s45, 0
      %s48 = sadd.s32 %s47, 1
      %s49 = scalar_select %p46, %s47, %s48
      %p52 = pneg %p46
      %p53 = scmp.eq.s32.totalorder %s16, 2
      %p54 = por %p52, %p53
      %p55 = scmp.ne.s32.totalorder %s47, %s50
      %p56 = scmp.eq.s32.totalorder %s16, 0
      %p57 = por %p55, %p56
      %p58 = scmp.ne.s32.totalorder %s47, %s50
      %p59 = scmp.eq.s32.totalorder %s21, 2
      %p60 = por %p58, %p59
      %p61 = scmp.ne.s32.totalorder %s50, %s51
      %p62 = scmp.eq.s32.totalorder %s21, 0
      %p63 = por %p61, %p62
      %p64 = scmp.ne.s32.totalorder %s50, %s51
      %p65 = scmp.eq.s32.totalorder %s22, 2
      %p66 = por %p64, %p65
      %p68 = scmp.ne.s32.totalorder %s51, %s67
      %p69 = scmp.eq.s32.totalorder %s22, 0
      %p70 = por %p68, %p69
      %s71 = ssub.s32 %s25, %s34
      %s72 = ssub.s32 %s24, %s38
      %s73 = sor.u32 %s71, %s72
      %p74 = scmp.eq.s32.totalorder %s73, 0
      %s76 = sadd.s32 %s75, 1
      %s77 = scalar_select %p74, %s75, %s76
      %p80 = pneg %p74
      %p81 = scmp.eq.s32.totalorder %s16, 2
      %p82 = por %p80, %p81
      %p83 = scmp.ne.s32.totalorder %s75, %s78
      %p84 = scmp.eq.s32.totalorder %s16, 0
      %p85 = por %p83, %p84
      %p86 = scmp.ne.s32.totalorder %s75, %s78
      %p87 = scmp.eq.s32.totalorder %s21, 2
      %p88 = por %p86, %p87
      %p89 = scmp.ne.s32.totalorder %s78, %s79
      %p90 = scmp.eq.s32.totalorder %s21, 0
      %p91 = por %p89, %p90
      %p92 = scmp.ne.s32.totalorder %s78, %s79
      %p93 = scmp.eq.s32.totalorder %s22, 2
      %p94 = por %p92, %p93
      %p96 = scmp.ne.s32.totalorder %s79, %s95
      %p97 = scmp.eq.s32.totalorder %s22, 0
      %p98 = por %p96, %p97
      %s99 = ssub.s32 %s24, %s38
      %p100 = scmp.eq.s32.totalorder %s99, 0
      %s102 = sadd.s32 %s101, 1
      %s103 = scalar_select %p100, %s101, %s102
      %p106 = pneg %p100
      %p107 = scmp.eq.s32.totalorder %s16, 2
      %p108 = por %p106, %p107
      %p109 = scmp.ne.s32.totalorder %s101, %s104
      %p110 = scmp.eq.s32.totalorder %s16, 0
      %p111 = por %p109, %p110
      %p112 = scmp.ne.s32.totalorder %s101, %s104
      %p113 = scmp.eq.s32.totalorder %s21, 2
      %p114 = por %p112, %p113
      %p115 = scmp.ne.s32.totalorder %s104, %s105
      %p116 = scmp.eq.s32.totalorder %s21, 0
      %p117 = por %p115, %p116
      %p118 = scmp.ne.s32.totalorder %s104, %s105
      %p119 = scmp.eq.s32.totalorder %s22, 2
      %p120 = por %p118, %p119
      %p122 = scmp.ne.s32.totalorder %s105, %s121
      %p123 = scmp.eq.s32.totalorder %s22, 0
      %p124 = por %p122, %p123
      %s125 = ssub.s32 %s23, %s42
      %s126 = ssub.s32 %s24, %s38
      %s127 = sor.u32 %s125, %s126
      %p128 = scmp.eq.s32.totalorder %s127, 0
      %s130 = sadd.s32 %s129, 1
      %s131 = scalar_select %p128, %s129, %s130
      %p134 = pneg %p128
      %p135 = scmp.eq.s32.totalorder %s16, 2
      %p136 = por %p134, %p135
      %p137 = scmp.ne.s32.totalorder %s129, %s132
      %p138 = scmp.eq.s32.totalorder %s16, 0
      %p139 = por %p137, %p138
      %p140 = scmp.ne.s32.totalorder %s129, %s132
      %p141 = scmp.eq.s32.totalorder %s21, 2
      %p142 = por %p140, %p141
      %p143 = scmp.ne.s32.totalorder %s132, %s133
      %p144 = scmp.eq.s32.totalorder %s21, 0
      %p145 = por %p143, %p144
      %p146 = scmp.ne.s32.totalorder %s132, %s133
      %p147 = scmp.eq.s32.totalorder %s22, 2
      %p148 = por %p146, %p147
      %p150 = scmp.ne.s32.totalorder %s133, %s149
      %p151 = scmp.eq.s32.totalorder %s22, 0
      %p152 = por %p150, %p151
      %p153 = scmp.le.s32.totalorder 1, %s16
      %p154 = scmp.lt.s32.totalorder %s16, 4
      %p155 = pnand %p153, %p154
      %p156 = pneg %p155
      // Predicated region
      $region9: #{tpu_custom_call.1} parent=5 // pred_check
        _
      $region10: #{tpu_custom_call.1} parent=5 // pred_check_branch
        %158 = sbr.rel (%p155) target = $region12
      $region11: #{tpu_custom_call.1} parent=5 // pred_region
        %s159 = ssub.s32 %s16, 1
        // Predicated region
        $region13: #{tpu_custom_call.1} parent=11 // pred_check
          %p160 = pneg %p91
        $region14: #{tpu_custom_call.1} parent=11 // pred_check_branch
          %162 = sbr.rel (%p160) target = $region16
        $region15: #{tpu_custom_call.1} parent=11 // pred_region
          %s163 = smul.u32 16, %s28
          %s165 = ssub.s32 1024, 1024
          %166 = vsyncadd [#allocation6], %s165
          %s167 = sadd.s32 %s27, %s163
          %s168 = smul.addr %s167, 64
          %s169 = scalar_lea.hbm %s1, %s168
          %s170 = sshll.u32 [#allocation5], 4
          %s171 = int_to_ptr.vmem [resolvable:$true] %s170
          %176 = dma.hbm_to_vmem [thread:$0]  %s169, 1024, %s171, [#allocation6], 64, 64, 4
        $region16: #{tpu_custom_call.1} parent=11 // pred_fallthru
          _
        // Predicated region
        $region17: #{tpu_custom_call.1} parent=11 // pred_check
          %p177 = pneg %p117
        $region18: #{tpu_custom_call.1} parent=11 // pred_check_branch
          %179 = sbr.rel (%p177) target = $region20
        $region19: #{tpu_custom_call.1} parent=11 // pred_region
          %p180 = scmp.lt.s32.totalorder %s27, 0
          %s181 = scalar_select %p180, %s27, 0
          %s182 = scalar_lea.vmem %s2, %s181
        $region20: #{tpu_custom_call.1} parent=11 // pred_fallthru
          _
      $region12: #{tpu_custom_call.1} parent=5 // pred_fallthru
        _
      %p183 = scmp.lt.s32.totalorder %s16, 3
      // Predicated region
      $region21: #{tpu_custom_call.1} parent=5 // pred_check
        %p184 = pneg %p183
      $region22: #{tpu_custom_call.1} parent=5 // pred_check_branch
        %186 = sbr.rel (%p184) target = $region24
      $region23: #{tpu_custom_call.1} parent=5 // pred_region
        // Predicated region
        $region25: #{tpu_custom_call.1} parent=23 // pred_check
          %p187 = pneg %p57
        $region26: #{tpu_custom_call.1} parent=23 // pred_check_branch
          %189 = sbr.rel (%p187) target = $region28
        $region27: #{tpu_custom_call.1} parent=23 // pred_region
          %s190 = sand.u32 %s47, 1
          %s191 = scalar_lea.sflag [#allocation3], %s190
          %s192 = sand.u32 %s47, 1
          %s193 = smul.addr %s192, 192
          %s194 = scalar_lea.vmem [#allocation2], %s193
          %s195 = smul.u32 48, %s23
          %s197 = ssub.s32 3072, 3072
          %198 = vsyncadd %s191, %s197
          %s199 = sadd.s32 %s25, %s195
          %s200 = smul.addr %s199, 64
          %s201 = scalar_lea.hbm %s0, %s200
          %s202 = sshll.u32 %s194, 4
          %s203 = int_to_ptr.vmem [resolvable:$true] %s202
          %208 = dma.hbm_to_vmem [thread:$0]  %s201, 3072, %s203, %s191, 64, 64, 4
        $region28: #{tpu_custom_call.1} parent=23 // pred_fallthru
          _
      $region24: #{tpu_custom_call.1} parent=5 // pred_fallthru
        _
      %p209 = scmp.le.s32.totalorder 1, %s16
      %p210 = scmp.lt.s32.totalorder %s16, 4
      %p211 = pnand %p209, %p210
      %p212 = pneg %p211
      // Predicated region
      $region29: #{tpu_custom_call.1} parent=5 // pred_check
        _
      $region30: #{tpu_custom_call.1} parent=5 // pred_check_branch
        %214 = sbr.rel (%p211) target = $region32
      $region31: #{tpu_custom_call.1} parent=5 // pred_region
        %s215 = ssub.s32 %s16, 1
        %s216 = sand.u32 %s50, 1
        %s217 = scalar_lea.sflag [#allocation3], %s216
        %s218 = sand.u32 %s50, 1
        %s219 = smul.addr %s218, 192
        %s220 = scalar_lea.vmem [#allocation2], %s219
        // Predicated region
        $region33: #{tpu_custom_call.1} parent=31 // pred_check
          %p221 = pneg %p63
        $region34: #{tpu_custom_call.1} parent=31 // pred_check_branch
          %223 = sbr.rel (%p221) target = $region36
        $region35: #{tpu_custom_call.1} parent=31 // pred_region
          %224 = dma.done %s217, 3072
        $region36: #{tpu_custom_call.1} parent=31 // pred_fallthru
          _
        // Predicated region
        $region37: #{tpu_custom_call.1} parent=31 // pred_check
          %p225 = pneg %p91
        $region38: #{tpu_custom_call.1} parent=31 // pred_check_branch
          %227 = sbr.rel (%p225) target = $region40
        $region39: #{tpu_custom_call.1} parent=31 // pred_region
          %228 = dma.done [#allocation6], 1024
        $region40: #{tpu_custom_call.1} parent=31 // pred_fallthru
          _
        %s229 = sand.u32 %s50, 1
        %s230 = scalar_lea.sflag [#allocation3], %s229
        %s231 = sand.u32 %s50, 1
        %s232 = smul.addr %s231, 192
        %s233 = scalar_lea.vmem [#allocation2], %s232
        %p234 = pneg %p63
        %p235 = pneg %p60
        %p236 = pneg %p91
        %p237 = pneg %p88
        %p238 = scmp.lt.s32.totalorder %s27, 0
        %s239 = scalar_select %p238, %s27, 0
        %s240 = scalar_lea.vmem %s2, %s239
        %p241 = pneg %p117
        %p242 = pneg %p114
        %p243 = pneg %p145
        %p244 = pneg %p142
        %s245 = sand.u32 %s132, 1
        %s246 = scalar_lea.sflag [#allocation4], %s245
        %s247 = sand.u32 %s132, 1
        %s248 = smul.addr %s247, 192
        %s249 = scalar_lea.vmem [#allocation7], %s248
        %s250 = smul.u32 48, %s26
        %s251 = smul.u32 16, %s28
        %p252 = scmp.lt.s32.totalorder %s27, 0
        %s253 = scalar_select %p252, %s27, 0
        %s254 = scalar_lea.vmem %s2, %s253
        %s255 = smul.u32 48, %s26
        %v257 = vld [vmem:[%s220] sm:$0xf]
        %v258 = vld [vmem:[%s220 + $0x4] sm:$0xf]
        %v259 = vld [vmem:[%s220 + $0x8] sm:$0xf]
        %v260 = vld [vmem:[%s220 + $0xc] sm:$0xf]
        %v261 = vld [vmem:[%s220 + $0x10] sm:$0xf]
        %v262 = vld [vmem:[%s220 + $0x14] sm:$0xf]
        %v263 = vld [vmem:[%s220 + $0x18] sm:$0xf]
        %v264 = vld [vmem:[%s220 + $0x1c] sm:$0xf]
        %v265 = vld [vmem:[%s220 + $0x20] sm:$0xf]
        %v266 = vld [vmem:[%s220 + $0x24] sm:$0xf]
        %v267 = vld [vmem:[%s220 + $0x28] sm:$0xf]
        %v268 = vld [vmem:[%s220 + $0x2c] sm:$0xf]
        %v269 = vld [vmem:[%s220 + $0x30] sm:$0xf]
        %v270 = vld [vmem:[%s220 + $0x34] sm:$0xf]
        %v271 = vld [vmem:[%s220 + $0x38] sm:$0xf]
        %v272 = vld [vmem:[%s220 + $0x3c] sm:$0xf]
        %v273 = vld [vmem:[%s220 + $0x40] sm:$0xf]
        %v274 = vld [vmem:[%s220 + $0x44] sm:$0xf]
        %v275 = vld [vmem:[%s220 + $0x48] sm:$0xf]
        %v276 = vld [vmem:[%s220 + $0x4c] sm:$0xf]
        %v277 = vld [vmem:[%s220 + $0x50] sm:$0xf]
        %v278 = vld [vmem:[%s220 + $0x54] sm:$0xf]
        %v279 = vld [vmem:[%s220 + $0x58] sm:$0xf]
        %v280 = vld [vmem:[%s220 + $0x5c] sm:$0xf]
        %v281 = vld [vmem:[%s220 + $0x60] sm:$0xf]
        %v282 = vld [vmem:[%s220 + $0x64] sm:$0xf]
        %v283 = vld [vmem:[%s220 + $0x68] sm:$0xf]
        %v284 = vld [vmem:[%s220 + $0x6c] sm:$0xf]
        %v285 = vld [vmem:[%s220 + $0x70] sm:$0xf]
        %v286 = vld [vmem:[%s220 + $0x74] sm:$0xf]
        %v287 = vld [vmem:[%s220 + $0x78] sm:$0xf]
        %v288 = vld [vmem:[%s220 + $0x7c] sm:$0xf]
        %v289 = vld [vmem:[%s220 + $0x80] sm:$0xf]
        %v290 = vld [vmem:[%s220 + $0x84] sm:$0xf]
        %v291 = vld [vmem:[%s220 + $0x88] sm:$0xf]
        %v292 = vld [vmem:[%s220 + $0x8c] sm:$0xf]
        %v293 = vld [vmem:[%s220 + $0x90] sm:$0xf]
        %v294 = vld [vmem:[%s220 + $0x94] sm:$0xf]
        %v295 = vld [vmem:[%s220 + $0x98] sm:$0xf]
        %v296 = vld [vmem:[%s220 + $0x9c] sm:$0xf]
        %v297 = vld [vmem:[%s220 + $0xa0] sm:$0xf]
        %v298 = vld [vmem:[%s220 + $0xa4] sm:$0xf]
        %v299 = vld [vmem:[%s220 + $0xa8] sm:$0xf]
        %v300 = vld [vmem:[%s220 + $0xac] sm:$0xf]
        %v301 = vld [vmem:[%s220 + $0xb0] sm:$0xf]
        %v302 = vld [vmem:[%s220 + $0xb4] sm:$0xf]
        %v303 = vld [vmem:[%s220 + $0xb8] sm:$0xf]
        %v304 = vld [vmem:[%s220 + $0xbc] sm:$0xf]
        %v305 = vld [vmem:[#allocation5] sm:$0xf]
        %v306 = vld [vmem:[#allocation5 + $0x4] sm:$0xf]
        %v307 = vld [vmem:[#allocation5 + $0x8] sm:$0xf]
        %v308 = vld [vmem:[#allocation5 + $0xc] sm:$0xf]
        %v309 = vld [vmem:[#allocation5 + $0x10] sm:$0xf]
        %v310 = vld [vmem:[#allocation5 + $0x14] sm:$0xf]
        %v311 = vld [vmem:[#allocation5 + $0x18] sm:$0xf]
        %v312 = vld [vmem:[#allocation5 + $0x1c] sm:$0xf]
        %v313 = vld [vmem:[#allocation5 + $0x20] sm:$0xf]
        %v314 = vld [vmem:[#allocation5 + $0x24] sm:$0xf]
        %v315 = vld [vmem:[#allocation5 + $0x28] sm:$0xf]
        %v316 = vld [vmem:[#allocation5 + $0x2c] sm:$0xf]
        %v317 = vld [vmem:[#allocation5 + $0x30] sm:$0xf]
        %v318 = vld [vmem:[#allocation5 + $0x34] sm:$0xf]
        %v319 = vld [vmem:[#allocation5 + $0x38] sm:$0xf]
        %v320 = vld [vmem:[#allocation5 + $0x3c] sm:$0xf]
        %v321 = vld [vmem:[%s254] sm:$0x1]
        %v323 = vlaneseq
        %v324 = vshrl.u32 %v323, 7
        %v325 = vsub.s32 0, %v324
        %v326 = vrot.slane %v321, %v325
        %v376 = vunpack.c.l.b16 %v257
        %v377 = vunpack.c.l.b16 %v258
        %v378 = vunpack.c.l.b16 %v259
        %v379 = vunpack.c.l.b16 %v260
        %v380 = vunpack.c.l.b16 %v261
        %v381 = vunpack.c.l.b16 %v262
        %v382 = vunpack.c.l.b16 %v263
        %v383 = vunpack.c.l.b16 %v264
        %v384 = vunpack.c.l.b16 %v265
        %v385 = vunpack.c.l.b16 %v266
        %v386 = vunpack.c.l.b16 %v267
        %v387 = vunpack.c.l.b16 %v268
        %v388 = vunpack.c.l.b16 %v269
        %v389 = vunpack.c.l.b16 %v270
        %v390 = vunpack.c.l.b16 %v271
        %v391 = vunpack.c.l.b16 %v272
        %v392 = vunpack.c.l.b16 %v273
        %v393 = vunpack.c.l.b16 %v274
        %v394 = vunpack.c.l.b16 %v275
        %v395 = vunpack.c.l.b16 %v276
        %v396 = vunpack.c.l.b16 %v277
        %v397 = vunpack.c.l.b16 %v278
        %v398 = vunpack.c.l.b16 %v279
        %v399 = vunpack.c.l.b16 %v280
        %v400 = vunpack.c.l.b16 %v281
        %v401 = vunpack.c.l.b16 %v282
        %v402 = vunpack.c.l.b16 %v283
        %v403 = vunpack.c.l.b16 %v284
        %v404 = vunpack.c.l.b16 %v285
        %v405 = vunpack.c.l.b16 %v286
        %v406 = vunpack.c.l.b16 %v287
        %v407 = vunpack.c.l.b16 %v288
        %v408 = vunpack.c.l.b16 %v289
        %v409 = vunpack.c.l.b16 %v290
        %v410 = vunpack.c.l.b16 %v291
        %v411 = vunpack.c.l.b16 %v292
        %v412 = vunpack.c.l.b16 %v293
        %v413 = vunpack.c.l.b16 %v294
        %v414 = vunpack.c.l.b16 %v295
        %v415 = vunpack.c.l.b16 %v296
        %v416 = vunpack.c.l.b16 %v297
        %v417 = vunpack.c.l.b16 %v298
        %v418 = vunpack.c.l.b16 %v299
        %v419 = vunpack.c.l.b16 %v300
        %v420 = vunpack.c.l.b16 %v301
        %v421 = vunpack.c.l.b16 %v302
        %v422 = vunpack.c.l.b16 %v303
        %v423 = vunpack.c.l.b16 %v304
        %v424 = vpack.c.b16 %v377, %v376
        %v425 = vpack.c.b16 %v379, %v378
        %v426 = vpack.c.b16 %v381, %v380
        %v427 = vpack.c.b16 %v383, %v382
        %v428 = vpack.c.b16 %v385, %v384
        %v429 = vpack.c.b16 %v387, %v386
        %v430 = vpack.c.b16 %v389, %v388
        %v431 = vpack.c.b16 %v391, %v390
        %v432 = vpack.c.b16 %v393, %v392
        %v433 = vpack.c.b16 %v395, %v394
        %v434 = vpack.c.b16 %v397, %v396
        %v435 = vpack.c.b16 %v399, %v398
        %v436 = vpack.c.b16 %v401, %v400
        %v437 = vpack.c.b16 %v403, %v402
        %v438 = vpack.c.b16 %v405, %v404
        %v439 = vpack.c.b16 %v407, %v406
        %v440 = vpack.c.b16 %v409, %v408
        %v441 = vpack.c.b16 %v411, %v410
        %v442 = vpack.c.b16 %v413, %v412
        %v443 = vpack.c.b16 %v415, %v414
        %v444 = vpack.c.b16 %v417, %v416
        %v445 = vpack.c.b16 %v419, %v418
        %v446 = vpack.c.b16 %v421, %v420
        %v447 = vpack.c.b16 %v423, %v422
        %v488 = vunpack.c.l.b16 %v305
        %v489 = vunpack.c.l.b16 %v306
        %v490 = vunpack.c.l.b16 %v307
        %v491 = vunpack.c.l.b16 %v308
        %v492 = vunpack.c.l.b16 %v309
        %v493 = vunpack.c.l.b16 %v310
        %v494 = vunpack.c.l.b16 %v311
        %v495 = vunpack.c.l.b16 %v312
        %v496 = vunpack.c.l.b16 %v313
        %v497 = vunpack.c.l.b16 %v314
        %v498 = vunpack.c.l.b16 %v315
        %v499 = vunpack.c.l.b16 %v316
        %v500 = vunpack.c.l.b16 %v317
        %v501 = vunpack.c.l.b16 %v318
        %v502 = vunpack.c.l.b16 %v319
        %v503 = vunpack.c.l.b16 %v320
        %v504 = vpack.c.b16 %v489, %v488
        %v505 = vpack.c.b16 %v491, %v490
        %v506 = vpack.c.b16 %v493, %v492
        %v507 = vpack.c.b16 %v495, %v494
        %v508 = vpack.c.b16 %v497, %v496
        %v509 = vpack.c.b16 %v499, %v498
        %v510 = vpack.c.b16 %v501, %v500
        %v511 = vpack.c.b16 %v503, %v502
        %520 = vmatprep.subr.bf16.mxu0 0
        %521 = vmatpush1.bf16.msra.mxu0 %v511
        %522 = vmatprep.subr.bf16.mxu0 0
        %523 = vmatpush1.bf16.msra.mxu0 %v510
        %524 = vmatprep.subr.bf16.mxu0 0
        %525 = vmatpush1.bf16.msra.mxu0 %v509
        %526 = vmatprep.subr.bf16.mxu0 0
        %527 = vmatpush1.bf16.msra.mxu0 %v508
        %528 = vmatprep.subr.bf16.mxu0 0
        %529 = vmatpush1.bf16.msra.mxu0 %v507
        %530 = vmatprep.subr.bf16.mxu0 0
        %531 = vmatpush1.bf16.msra.mxu0 %v506
        %532 = vmatprep.subr.bf16.mxu0 0
        %533 = vmatpush1.bf16.msra.mxu0 %v505
        %534 = vmatprep.subr.bf16.mxu0 0
        %535 = vmatpush1.bf16.msra.mxu0 %v504
        %536 = vmatprep.subr.bf16.mxu0 0
        %537 = vmatpush2.bf16.msra.mxu0 0
        %538 = vmatprep.subr.bf16.mxu0 0
        %539 = vmatpush2.bf16.msra.mxu0 0
        %540 = vmatprep.subr.bf16.mxu0 0
        %541 = vmatpush2.bf16.msra.mxu0 0
        %542 = vmatprep.subr.bf16.mxu0 0
        %543 = vmatpush2.bf16.msra.mxu0 0
        %544 = vmatprep.subr.bf16.mxu0 0
        %545 = vmatpush2.bf16.msra.mxu0 0
        %546 = vmatprep.subr.bf16.mxu0 0
        %547 = vmatpush2.bf16.msra.mxu0 0
        %548 = vmatprep.subr.bf16.mxu0 0
        %549 = vmatpush2.bf16.msra.mxu0 0
        %550 = vmatprep.subr.bf16.mxu0 0
        %551 = vmatpush2.bf16.msra.mxu0 0
        %552 = vmatprep.mubr.bf16.mxu0 0
        %553 = vmatmul.mubr.bf16.gmra.mxu0 %v424
        %v554 = vpop.f32.mrf.mxu0
        %v555 = vadd.f32 %v326, %v554
        %v556 = vpop.f32.mrf.mxu0
        %v557 = vpop.f32.mrf.mxu0
        %v558 = vadd.f32 %v326, %v557
        %v559 = vpop.f32.mrf.mxu0
        %560 = vmatprep.mubr.bf16.mxu0 0
        %561 = vmatmul.mubr.bf16.gmra.mxu0 %v425
        %v562 = vpop.f32.mrf.mxu0
        %v563 = vadd.f32 %v326, %v562
        %v564 = vpop.f32.mrf.mxu0
        %v565 = vpop.f32.mrf.mxu0
        %v566 = vadd.f32 %v326, %v565
        %v567 = vpop.f32.mrf.mxu0
        %568 = vmatprep.mubr.bf16.mxu0 0
        %569 = vmatmul.mubr.bf16.gmra.mxu0 %v426
        %v570 = vpop.f32.mrf.mxu0
        %v571 = vadd.f32 %v326, %v570
        %v572 = vpop.f32.mrf.mxu0
        %v573 = vpop.f32.mrf.mxu0
        %v574 = vadd.f32 %v326, %v573
        %v575 = vpop.f32.mrf.mxu0
        %576 = vmatprep.mubr.bf16.mxu0 0
        %577 = vmatmul.mubr.bf16.gmra.mxu0 %v427
        %v578 = vpop.f32.mrf.mxu0
        %v579 = vadd.f32 %v326, %v578
        %v580 = vpop.f32.mrf.mxu0
        %v581 = vpop.f32.mrf.mxu0
        %v582 = vadd.f32 %v326, %v581
        %v583 = vpop.f32.mrf.mxu0
        %584 = vmatprep.mubr.bf16.mxu0 0
        %585 = vmatmul.mubr.bf16.gmra.mxu0 %v428
        %v586 = vpop.f32.mrf.mxu0
        %v587 = vadd.f32 %v326, %v586
        %v588 = vpop.f32.mrf.mxu0
        %v589 = vpop.f32.mrf.mxu0
        %v590 = vadd.f32 %v326, %v589
        %v591 = vpop.f32.mrf.mxu0
        %592 = vmatprep.mubr.bf16.mxu0 0
        %593 = vmatmul.mubr.bf16.gmra.mxu0 %v429
        %v594 = vpop.f32.mrf.mxu0
        %v595 = vadd.f32 %v326, %v594
        %v596 = vpop.f32.mrf.mxu0
        %v597 = vpop.f32.mrf.mxu0
        %v598 = vadd.f32 %v326, %v597
        %v599 = vpop.f32.mrf.mxu0
        %600 = vmatprep.mubr.bf16.mxu0 0
        %601 = vmatmul.mubr.bf16.gmra.mxu0 %v430
        %v602 = vpop.f32.mrf.mxu0
        %v603 = vadd.f32 %v326, %v602
        %v604 = vpop.f32.mrf.mxu0
        %v605 = vpop.f32.mrf.mxu0
        %v606 = vadd.f32 %v326, %v605
        %v607 = vpop.f32.mrf.mxu0
        %608 = vmatprep.mubr.bf16.mxu0 0
        %609 = vmatmul.mubr.bf16.gmra.mxu0 %v431
        %v610 = vpop.f32.mrf.mxu0
        %v611 = vadd.f32 %v326, %v610
        %v612 = vpop.f32.mrf.mxu0
        %v613 = vpop.f32.mrf.mxu0
        %v614 = vadd.f32 %v326, %v613
        %v615 = vpop.f32.mrf.mxu0
        %616 = vmatprep.mubr.bf16.mxu0 0
        %617 = vmatmul.mubr.bf16.gmra.mxu0 %v432
        %v618 = vpop.f32.mrf.mxu0
        %v619 = vadd.f32 %v326, %v618
        %v620 = vpop.f32.mrf.mxu0
        %v621 = vpop.f32.mrf.mxu0
        %v622 = vadd.f32 %v326, %v621
        %v623 = vpop.f32.mrf.mxu0
        %624 = vmatprep.mubr.bf16.mxu0 0
        %625 = vmatmul.mubr.bf16.gmra.mxu0 %v433
        %v626 = vpop.f32.mrf.mxu0
        %v627 = vadd.f32 %v326, %v626
        %v628 = vpop.f32.mrf.mxu0
        %v629 = vpop.f32.mrf.mxu0
        %v630 = vadd.f32 %v326, %v629
        %v631 = vpop.f32.mrf.mxu0
        %632 = vmatprep.mubr.bf16.mxu0 0
        %633 = vmatmul.mubr.bf16.gmra.mxu0 %v434
        %v634 = vpop.f32.mrf.mxu0
        %v635 = vadd.f32 %v326, %v634
        %v636 = vpop.f32.mrf.mxu0
        %v637 = vpop.f32.mrf.mxu0
        %v638 = vadd.f32 %v326, %v637
        %v639 = vpop.f32.mrf.mxu0
        %640 = vmatprep.mubr.bf16.mxu0 0
        %641 = vmatmul.mubr.bf16.gmra.mxu0 %v435
        %v642 = vpop.f32.mrf.mxu0
        %v643 = vadd.f32 %v326, %v642
        %v644 = vpop.f32.mrf.mxu0
        %v645 = vpop.f32.mrf.mxu0
        %v646 = vadd.f32 %v326, %v645
        %v647 = vpop.f32.mrf.mxu0
        %648 = vmatprep.mubr.bf16.mxu0 0
        %649 = vmatmul.mubr.bf16.gmra.mxu0 %v436
        %v650 = vpop.f32.mrf.mxu0
        %v651 = vadd.f32 %v326, %v650
        %v652 = vpop.f32.mrf.mxu0
        %v653 = vpop.f32.mrf.mxu0
        %v654 = vadd.f32 %v326, %v653
        %v655 = vpop.f32.mrf.mxu0
        %656 = vmatprep.mubr.bf16.mxu0 0
        %657 = vmatmul.mubr.bf16.gmra.mxu0 %v437
        %v658 = vpop.f32.mrf.mxu0
        %v659 = vadd.f32 %v326, %v658
        %v660 = vpop.f32.mrf.mxu0
        %v661 = vpop.f32.mrf.mxu0
        %v662 = vadd.f32 %v326, %v661
        %v663 = vpop.f32.mrf.mxu0
        %664 = vmatprep.mubr.bf16.mxu0 0
        %665 = vmatmul.mubr.bf16.gmra.mxu0 %v438
        %v666 = vpop.f32.mrf.mxu0
        %v667 = vadd.f32 %v326, %v666
        %v668 = vpop.f32.mrf.mxu0
        %v669 = vpop.f32.mrf.mxu0
        %v670 = vadd.f32 %v326, %v669
        %v671 = vpop.f32.mrf.mxu0
        %672 = vmatprep.mubr.bf16.mxu0 0
        %673 = vmatmul.mubr.bf16.gmra.mxu0 %v439
        %v674 = vpop.f32.mrf.mxu0
        %v675 = vadd.f32 %v326, %v674
        %v676 = vpop.f32.mrf.mxu0
        %v677 = vpop.f32.mrf.mxu0
        %v678 = vadd.f32 %v326, %v677
        %v679 = vpop.f32.mrf.mxu0
        %680 = vmatprep.mubr.bf16.mxu0 0
        %681 = vmatmul.mubr.bf16.gmra.mxu0 %v440
        %v682 = vpop.f32.mrf.mxu0
        %v683 = vadd.f32 %v326, %v682
        %v684 = vpop.f32.mrf.mxu0
        %v685 = vpop.f32.mrf.mxu0
        %v686 = vadd.f32 %v326, %v685
        %v687 = vpop.f32.mrf.mxu0
        %688 = vmatprep.mubr.bf16.mxu0 0
        %689 = vmatmul.mubr.bf16.gmra.mxu0 %v441
        %v690 = vpop.f32.mrf.mxu0
        %v691 = vadd.f32 %v326, %v690
        %v692 = vpop.f32.mrf.mxu0
        %v693 = vpop.f32.mrf.mxu0
        %v694 = vadd.f32 %v326, %v693
        %v695 = vpop.f32.mrf.mxu0
        %696 = vmatprep.mubr.bf16.mxu0 0
        %697 = vmatmul.mubr.bf16.gmra.mxu0 %v442
        %v698 = vpop.f32.mrf.mxu0
        %v699 = vadd.f32 %v326, %v698
        %v700 = vpop.f32.mrf.mxu0
        %v701 = vpop.f32.mrf.mxu0
        %v702 = vadd.f32 %v326, %v701
        %v703 = vpop.f32.mrf.mxu0
        %704 = vmatprep.mubr.bf16.mxu0 0
        %705 = vmatmul.mubr.bf16.gmra.mxu0 %v443
        %v706 = vpop.f32.mrf.mxu0
        %v707 = vadd.f32 %v326, %v706
        %v708 = vpop.f32.mrf.mxu0
        %v709 = vpop.f32.mrf.mxu0
        %v710 = vadd.f32 %v326, %v709
        %v711 = vpop.f32.mrf.mxu0
        %712 = vmatprep.mubr.bf16.mxu0 0
        %713 = vmatmul.mubr.bf16.gmra.mxu0 %v444
        %v714 = vpop.f32.mrf.mxu0
        %v715 = vadd.f32 %v326, %v714
        %v716 = vpop.f32.mrf.mxu0
        %v717 = vpop.f32.mrf.mxu0
        %v718 = vadd.f32 %v326, %v717
        %v719 = vpop.f32.mrf.mxu0
        %720 = vmatprep.mubr.bf16.mxu0 0
        %721 = vmatmul.mubr.bf16.gmra.mxu0 %v445
        %v722 = vpop.f32.mrf.mxu0
        %v723 = vadd.f32 %v326, %v722
        %v724 = vpop.f32.mrf.mxu0
        %v725 = vpop.f32.mrf.mxu0
        %v726 = vadd.f32 %v326, %v725
        %v727 = vpop.f32.mrf.mxu0
        %728 = vmatprep.mubr.bf16.mxu0 0
        %729 = vmatmul.mubr.bf16.gmra.mxu0 %v446
        %v730 = vpop.f32.mrf.mxu0
        %v731 = vadd.f32 %v326, %v730
        %v732 = vpop.f32.mrf.mxu0
        %v733 = vpop.f32.mrf.mxu0
        %v734 = vadd.f32 %v326, %v733
        %v735 = vpop.f32.mrf.mxu0
        %736 = vmatprep.mubr.bf16.mxu0 0
        %737 = vmatmul.mubr.bf16.gmra.mxu0 %v447
        %v738 = vpop.f32.mrf.mxu0
        %v739 = vadd.f32 %v326, %v738
        %v740 = vpop.f32.mrf.mxu0
        %v741 = vpop.f32.mrf.mxu0
        %v742 = vadd.f32 %v326, %v741
        %v743 = vpop.f32.mrf.mxu0
        %744 = vdwg.mxu0
        %v745 = vmax.f32 %v555, 0.0
        %v746 = vmax.f32 %v558, 0.0
        %v747 = vmax.f32 %v563, 0.0
        %v748 = vmax.f32 %v566, 0.0
        %v749 = vmax.f32 %v571, 0.0
        %v750 = vmax.f32 %v574, 0.0
        %v751 = vmax.f32 %v579, 0.0
        %v752 = vmax.f32 %v582, 0.0
        %v753 = vmax.f32 %v587, 0.0
        %v754 = vmax.f32 %v590, 0.0
        %v755 = vmax.f32 %v595, 0.0
        %v756 = vmax.f32 %v598, 0.0
        %v757 = vmax.f32 %v603, 0.0
        %v758 = vmax.f32 %v606, 0.0
        %v759 = vmax.f32 %v611, 0.0
        %v760 = vmax.f32 %v614, 0.0
        %v761 = vmax.f32 %v619, 0.0
        %v762 = vmax.f32 %v622, 0.0
        %v763 = vmax.f32 %v627, 0.0
        %v764 = vmax.f32 %v630, 0.0
        %v765 = vmax.f32 %v635, 0.0
        %v766 = vmax.f32 %v638, 0.0
        %v767 = vmax.f32 %v643, 0.0
        %v768 = vmax.f32 %v646, 0.0
        %v769 = vmax.f32 %v651, 0.0
        %v770 = vmax.f32 %v654, 0.0
        %v771 = vmax.f32 %v659, 0.0
        %v772 = vmax.f32 %v662, 0.0
        %v773 = vmax.f32 %v667, 0.0
        %v774 = vmax.f32 %v670, 0.0
        %v775 = vmax.f32 %v675, 0.0
        %v776 = vmax.f32 %v678, 0.0
        %v777 = vmax.f32 %v683, 0.0
        %v778 = vmax.f32 %v686, 0.0
        %v779 = vmax.f32 %v691, 0.0
        %v780 = vmax.f32 %v694, 0.0
        %v781 = vmax.f32 %v699, 0.0
        %v782 = vmax.f32 %v702, 0.0
        %v783 = vmax.f32 %v707, 0.0
        %v784 = vmax.f32 %v710, 0.0
        %v785 = vmax.f32 %v715, 0.0
        %v786 = vmax.f32 %v718, 0.0
        %v787 = vmax.f32 %v723, 0.0
        %v788 = vmax.f32 %v726, 0.0
        %v789 = vmax.f32 %v731, 0.0
        %v790 = vmax.f32 %v734, 0.0
        %v791 = vmax.f32 %v739, 0.0
        %v792 = vmax.f32 %v742, 0.0
        %v793 = vpack.c.bf16 %v746, %v745
        %v794 = vpack.c.bf16 %v748, %v747
        %v795 = vpack.c.bf16 %v750, %v749
        %v796 = vpack.c.bf16 %v752, %v751
        %v797 = vpack.c.bf16 %v754, %v753
        %v798 = vpack.c.bf16 %v756, %v755
        %v799 = vpack.c.bf16 %v758, %v757
        %v800 = vpack.c.bf16 %v760, %v759
        %v801 = vpack.c.bf16 %v762, %v761
        %v802 = vpack.c.bf16 %v764, %v763
        %v803 = vpack.c.bf16 %v766, %v765
        %v804 = vpack.c.bf16 %v768, %v767
        %v805 = vpack.c.bf16 %v770, %v769
        %v806 = vpack.c.bf16 %v772, %v771
        %v807 = vpack.c.bf16 %v774, %v773
        %v808 = vpack.c.bf16 %v776, %v775
        %v809 = vpack.c.bf16 %v778, %v777
        %v810 = vpack.c.bf16 %v780, %v779
        %v811 = vpack.c.bf16 %v782, %v781
        %v812 = vpack.c.bf16 %v784, %v783
        %v813 = vpack.c.bf16 %v786, %v785
        %v814 = vpack.c.bf16 %v788, %v787
        %v815 = vpack.c.bf16 %v790, %v789
        %v816 = vpack.c.bf16 %v792, %v791
        %v841 = vunpack.c.l.b16 %v793
        %v842 = vunpack.c.h.b16 %v793
        %v843 = vunpack.c.l.b16 %v794
        %v844 = vunpack.c.h.b16 %v794
        %v845 = vunpack.c.l.b16 %v795
        %v846 = vunpack.c.h.b16 %v795
        %v847 = vunpack.c.l.b16 %v796
        %v848 = vunpack.c.h.b16 %v796
        %v849 = vunpack.c.l.b16 %v797
        %v850 = vunpack.c.h.b16 %v797
        %v851 = vunpack.c.l.b16 %v798
        %v852 = vunpack.c.h.b16 %v798
        %v853 = vunpack.c.l.b16 %v799
        %v854 = vunpack.c.h.b16 %v799
        %v855 = vunpack.c.l.b16 %v800
        %v856 = vunpack.c.h.b16 %v800
        %v857 = vunpack.c.l.b16 %v801
        %v858 = vunpack.c.h.b16 %v801
        %v859 = vunpack.c.l.b16 %v802
        %v860 = vunpack.c.h.b16 %v802
        %v861 = vunpack.c.l.b16 %v803
        %v862 = vunpack.c.h.b16 %v803
        %v863 = vunpack.c.l.b16 %v804
        %v864 = vunpack.c.h.b16 %v804
        %v865 = vunpack.c.l.b16 %v805
        %v866 = vunpack.c.h.b16 %v805
        %v867 = vunpack.c.l.b16 %v806
        %v868 = vunpack.c.h.b16 %v806
        %v869 = vunpack.c.l.b16 %v807
        %v870 = vunpack.c.h.b16 %v807
        %v871 = vunpack.c.l.b16 %v808
        %v872 = vunpack.c.h.b16 %v808
        %v873 = vunpack.c.l.b16 %v809
        %v874 = vunpack.c.h.b16 %v809
        %v875 = vunpack.c.l.b16 %v810
        %v876 = vunpack.c.h.b16 %v810
        %v877 = vunpack.c.l.b16 %v811
        %v878 = vunpack.c.h.b16 %v811
        %v879 = vunpack.c.l.b16 %v812
        %v880 = vunpack.c.h.b16 %v812
        %v881 = vunpack.c.l.b16 %v813
        %v882 = vunpack.c.h.b16 %v813
        %v883 = vunpack.c.l.b16 %v814
        %v884 = vunpack.c.h.b16 %v814
        %v885 = vunpack.c.l.b16 %v815
        %v886 = vunpack.c.h.b16 %v815
        %v887 = vunpack.c.l.b16 %v816
        %v888 = vunpack.c.h.b16 %v816
        %v889 = vpack.c.b16 %v841, %v841
        %v890 = vpack.c.b16 %v842, %v842
        %v891 = vpack.c.b16 %v843, %v843
        %v892 = vpack.c.b16 %v844, %v844
        %v893 = vpack.c.b16 %v845, %v845
        %v894 = vpack.c.b16 %v846, %v846
        %v895 = vpack.c.b16 %v847, %v847
        %v896 = vpack.c.b16 %v848, %v848
        %v897 = vpack.c.b16 %v849, %v849
        %v898 = vpack.c.b16 %v850, %v850
        %v899 = vpack.c.b16 %v851, %v851
        %v900 = vpack.c.b16 %v852, %v852
        %v901 = vpack.c.b16 %v853, %v853
        %v902 = vpack.c.b16 %v854, %v854
        %v903 = vpack.c.b16 %v855, %v855
        %v904 = vpack.c.b16 %v856, %v856
        %v905 = vpack.c.b16 %v857, %v857
        %v906 = vpack.c.b16 %v858, %v858
        %v907 = vpack.c.b16 %v859, %v859
        %v908 = vpack.c.b16 %v860, %v860
        %v909 = vpack.c.b16 %v861, %v861
        %v910 = vpack.c.b16 %v862, %v862
        %v911 = vpack.c.b16 %v863, %v863
        %v912 = vpack.c.b16 %v864, %v864
        %v913 = vpack.c.b16 %v865, %v865
        %v914 = vpack.c.b16 %v866, %v866
        %v915 = vpack.c.b16 %v867, %v867
        %v916 = vpack.c.b16 %v868, %v868
        %v917 = vpack.c.b16 %v869, %v869
        %v918 = vpack.c.b16 %v870, %v870
        %v919 = vpack.c.b16 %v871, %v871
        %v920 = vpack.c.b16 %v872, %v872
        %v921 = vpack.c.b16 %v873, %v873
        %v922 = vpack.c.b16 %v874, %v874
        %v923 = vpack.c.b16 %v875, %v875
        %v924 = vpack.c.b16 %v876, %v876
        %v925 = vpack.c.b16 %v877, %v877
        %v926 = vpack.c.b16 %v878, %v878
        %v927 = vpack.c.b16 %v879, %v879
        %v928 = vpack.c.b16 %v880, %v880
        %v929 = vpack.c.b16 %v881, %v881
        %v930 = vpack.c.b16 %v882, %v882
        %v931 = vpack.c.b16 %v883, %v883
        %v932 = vpack.c.b16 %v884, %v884
        %v933 = vpack.c.b16 %v885, %v885
        %v934 = vpack.c.b16 %v886, %v886
        %v935 = vpack.c.b16 %v887, %v887
        %v936 = vpack.c.b16 %v888, %v888
        %985 = vst [vmem:[%s249] sm:$0xf] %v889
        %986 = vst [vmem:[%s249 + $0x4] sm:$0xf] %v890
        %987 = vst [vmem:[%s249 + $0x8] sm:$0xf] %v891
        %988 = vst [vmem:[%s249 + $0xc] sm:$0xf] %v892
        %989 = vst [vmem:[%s249 + $0x10] sm:$0xf] %v893
        %990 = vst [vmem:[%s249 + $0x14] sm:$0xf] %v894
        %991 = vst [vmem:[%s249 + $0x18] sm:$0xf] %v895
        %992 = vst [vmem:[%s249 + $0x1c] sm:$0xf] %v896
        %993 = vst [vmem:[%s249 + $0x20] sm:$0xf] %v897
        %994 = vst [vmem:[%s249 + $0x24] sm:$0xf] %v898
        %995 = vst [vmem:[%s249 + $0x28] sm:$0xf] %v899
        %996 = vst [vmem:[%s249 + $0x2c] sm:$0xf] %v900
        %997 = vst [vmem:[%s249 + $0x30] sm:$0xf] %v901
        %998 = vst [vmem:[%s249 + $0x34] sm:$0xf] %v902
        %999 = vst [vmem:[%s249 + $0x38] sm:$0xf] %v903
        %1000 = vst [vmem:[%s249 + $0x3c] sm:$0xf] %v904
        %1001 = vst [vmem:[%s249 + $0x40] sm:$0xf] %v905
        %1002 = vst [vmem:[%s249 + $0x44] sm:$0xf] %v906
        %1003 = vst [vmem:[%s249 + $0x48] sm:$0xf] %v907
        %1004 = vst [vmem:[%s249 + $0x4c] sm:$0xf] %v908
        %1005 = vst [vmem:[%s249 + $0x50] sm:$0xf] %v909
        %1006 = vst [vmem:[%s249 + $0x54] sm:$0xf] %v910
        %1007 = vst [vmem:[%s249 + $0x58] sm:$0xf] %v911
        %1008 = vst [vmem:[%s249 + $0x5c] sm:$0xf] %v912
        %1009 = vst [vmem:[%s249 + $0x60] sm:$0xf] %v913
        %1010 = vst [vmem:[%s249 + $0x64] sm:$0xf] %v914
        %1011 = vst [vmem:[%s249 + $0x68] sm:$0xf] %v915
        %1012 = vst [vmem:[%s249 + $0x6c] sm:$0xf] %v916
        %1013 = vst [vmem:[%s249 + $0x70] sm:$0xf] %v917
        %1014 = vst [vmem:[%s249 + $0x74] sm:$0xf] %v918
        %1015 = vst [vmem:[%s249 + $0x78] sm:$0xf] %v919
        %1016 = vst [vmem:[%s249 + $0x7c] sm:$0xf] %v920
        %1017 = vst [vmem:[%s249 + $0x80] sm:$0xf] %v921
        %1018 = vst [vmem:[%s249 + $0x84] sm:$0xf] %v922
        %1019 = vst [vmem:[%s249 + $0x88] sm:$0xf] %v923
        %1020 = vst [vmem:[%s249 + $0x8c] sm:$0xf] %v924
        %1021 = vst [vmem:[%s249 + $0x90] sm:$0xf] %v925
        %1022 = vst [vmem:[%s249 + $0x94] sm:$0xf] %v926
        %1023 = vst [vmem:[%s249 + $0x98] sm:$0xf] %v927
        %1024 = vst [vmem:[%s249 + $0x9c] sm:$0xf] %v928
        %1025 = vst [vmem:[%s249 + $0xa0] sm:$0xf] %v929
        %1026 = vst [vmem:[%s249 + $0xa4] sm:$0xf] %v930
        %1027 = vst [vmem:[%s249 + $0xa8] sm:$0xf] %v931
        %1028 = vst [vmem:[%s249 + $0xac] sm:$0xf] %v932
        %1029 = vst [vmem:[%s249 + $0xb0] sm:$0xf] %v933
        %1030 = vst [vmem:[%s249 + $0xb4] sm:$0xf] %v934
        %1031 = vst [vmem:[%s249 + $0xb8] sm:$0xf] %v935
        %1032 = vst [vmem:[%s249 + $0xbc] sm:$0xf] %v936
        %s1033 = sand.u32 %s132, 1
        %s1034 = scalar_lea.sflag [#allocation4], %s1033
        %s1035 = sand.u32 %s132, 1
        %s1036 = smul.addr %s1035, 192
        %s1037 = scalar_lea.vmem [#allocation7], %s1036
        // Predicated region
        $region41: #{tpu_custom_call.1} parent=31 // pred_check
          %p1038 = pneg %p142
        $region42: #{tpu_custom_call.1} parent=31 // pred_check_branch
          %1040 = sbr.rel (%p1038) target = $region44
        $region43: #{tpu_custom_call.1} parent=31 // pred_region
          %s1041 = smul.u32 48, %s26
          %s1043 = ssub.s32 3072, 3072
          %1044 = vsyncadd %s1034, %s1043
          %s1045 = sadd.s32 %s27, %s1041
          %s1046 = smul.addr %s1045, 64
          %s1047 = scalar_lea.hbm %s3, %s1046
          %s1048 = sshll.u32 %s1037, 4
          %s1049 = int_to_ptr.vmem [resolvable:$true] %s1048
          %1054 = dma.vmem_to_hbm [thread:$0]  %s1049, 3072, %s1047, %s1034, 64, 64, 4
        $region44: #{tpu_custom_call.1} parent=31 // pred_fallthru
          _
      $region32: #{tpu_custom_call.1} parent=5 // pred_fallthru
        _
      %p1055 = scmp.le.s32.totalorder 2, %s16
      // Predicated region
      $region45: #{tpu_custom_call.1} parent=5 // pred_check
        %p1056 = pneg %p1055
      $region46: #{tpu_custom_call.1} parent=5 // pred_check_branch
        %1058 = sbr.rel (%p1056) target = $region48
      $region47: #{tpu_custom_call.1} parent=5 // pred_region
        %s1059 = ssub.s32 %s16, 2
        // Predicated region
        $region49: #{tpu_custom_call.1} parent=47 // pred_check
          %p1060 = pneg %p148
        $region50: #{tpu_custom_call.1} parent=47 // pred_check_branch
          %1062 = sbr.rel (%p1060) target = $region52
        $region51: #{tpu_custom_call.1} parent=47 // pred_region
          %s1063 = sand.u32 %s133, 1
          %s1064 = scalar_lea.sflag [#allocation4], %s1063
          %s1065 = sand.u32 %s133, 1
          %s1066 = smul.addr %s1065, 192
          %s1067 = scalar_lea.vmem [#allocation7], %s1066
          %1068 = dma.done %s1064, 3072
        $region52: #{tpu_custom_call.1} parent=47 // pred_fallthru
          _
      $region48: #{tpu_custom_call.1} parent=5 // pred_fallthru
        _
    $region6: #{tpu_custom_call.1} parent=1 // loop_footer
      %s20 = sadd.s32 1, %s16
    $region7: #{tpu_custom_call.1} parent=1 // loop_footer_branch
      %15 = sbr.rel target = $region3
    $region8: #{tpu_custom_call.1} parent=1 // loop_exit
      _
    %1069 = vsyncpa [#allocation3], 1
    %s1070 = scalar_lea.sflag [#allocation3], 1
    %1071 = vsyncpa %s1070, 1
    %1072 = vsyncpa [#allocation6], 1
    %1073 = vsyncpa [#allocation4], 1
    %s1074 = scalar_lea.sflag [#allocation4], 1
    %1075 = vsyncpa %s1074, 1

</llo_original>
